<compile_context>
chip_gen: v6e
topology: v6e:2x2x1
jax: 0.10.0
libtpu: 0.0.40
codegen_flags: <defaults>
</compile_context>

<pallas_src>
import jax
import jax.numpy as jnp
from jax.experimental import pallas as pl
from jax.experimental.pallas import tpu as pltpu

LANE = 128            # TPU lane width
SLAB = 2 * LANE       # one slab row = 128 batch elements x 2 interleaved features


def _round_up(n: int, m: int) -> int:
    return ((n + m - 1) // m) * m


def _linear_sigmoid_kernel(params_ref, x_ref, o_ref):
    # params_ref: SMEM (3,) f32 = [w0, w1, b]
    # x_ref:      VMEM (tr, 256) input dtype -- feature-interleaved batch slab:
    #             lane 2i = feature 0 of batch elem i, lane 2i+1 = feature 1.
    # o_ref:      VMEM (tr, 256) f32 -- even lanes hold sigmoid(z); odd lanes
    #             are don't-care (discarded by the wrapper's final slice).
    w0 = params_ref[0]
    w1 = params_ref[1]
    b = params_ref[2]

    x = x_ref[...].astype(jnp.float32)
    # +1-lane neighbour: at even lane 2i this is feature 1 of the same batch
    # element.  jnp.roll(-1) == concat([x[:,1:], x[:,:1]]) -- unambiguous and
    # Mosaic-lowerable; pltpu.roll is the XLU-native alternative.
    x_nbr = jnp.roll(x, shift=-1, axis=1)

    z = x * w0 + x_nbr * w1 + b                  # VPU FMAs; valid at even lanes
    o_ref[...] = 1.0 / (1.0 + jnp.exp(-z))       # exact sigmoid (exp on EUP)


def simple_model_forward(x, weight, bias, *, block_rows: int = 2048):
    """sigmoid(x @ weight.T + bias).

    x:      (B, 2) float (f32 or bf16 -- converted to f32 inside the kernel)
    weight: (1, 2) float (PyTorch nn.Linear layout)
    bias:   (1,)   float
    returns (B, 1) float32
    """
    B, in_features = x.shape
    assert in_features == 2 and weight.shape == (1, 2) and bias.shape == (1,)

    # Scalar parameters resident in SMEM: [w0, w1, b].
    params = jnp.concatenate(
        [weight.reshape(-1), bias.reshape(-1)]).astype(jnp.float32)

    rows = pl.cdiv(B, LANE)                      # 128 batch elements per slab row
    if rows <= 8:
        tr = rows                                # single full-extent block
    else:
        tr = min(_round_up(block_rows, 8), _round_up(rows, 8))
        if _round_up(rows, tr) == tr:            # would be a 1-step grid:
            # keep >=2 grid steps so both v7x TensorCores share HBM bandwidth
            tr = max(8, _round_up(pl.cdiv(rows, 2), 8))
    rows_p = _round_up(rows, tr)
    Bp = rows_p * LANE

    if Bp != B:
        # Tail pad only (no transpose, no full-array relayout).
        x = jnp.pad(x, ((0, Bp - B), (0, 0)))
    x_slab = x.reshape(rows_p, SLAB)             # pure row-major reshape

    bytes_accessed = int(2 * Bp * x.dtype.itemsize + 4 * SLAB // LANE * Bp)
    out_slab = pl.pallas_call(
        _linear_sigmoid_kernel,
        out_shape=jax.ShapeDtypeStruct((rows_p, SLAB), jnp.float32),
        grid=(rows_p // tr,),
        in_specs=[
            # Whole (3,) param vector in SMEM: no per-step VMEM tile / DMA.
            pl.BlockSpec(memory_space=pltpu.MemorySpace.SMEM),
            pl.BlockSpec((tr, SLAB), lambda i: (i, 0)),
        ],
        out_specs=pl.BlockSpec((tr, SLAB), lambda i: (i, 0)),
        compiler_params=pltpu.CompilerParams(
            dimension_semantics=("parallel",)),  # batch tiles are independent
        cost_estimate=pl.CostEstimate(
            flops=8 * Bp, transcendentals=2 * Bp,
            bytes_accessed=bytes_accessed),
    )(params, x_slab)

    # Even lane of each (feature0, feature1) pair holds the result; view the
    # slab back as (Bp, 2) and keep column 0, dropping the tail padding.
    # TODO(synk): callers that can consume the padded slab directly avoid this
    # final slice entirely.
    return out_slab.reshape(Bp, 2)[:B, 0:1]


def _reference(x, weight, bias):
    return jax.nn.sigmoid(x.astype(jnp.float32) @ weight.T + bias)


if __name__ == "__main__":
    key = jax.random.PRNGKey(0)
    kx, kw, kb, kx2 = jax.random.split(key, 4)

    IN, OUT = 2, 1
    # Deterministic init mimicking nn.Linear's U(-1/sqrt(in), 1/sqrt(in)).
    bound = 1.0 / jnp.sqrt(jnp.float32(IN))
    weight = jax.random.uniform(kw, (OUT, IN), jnp.float32, -bound, bound)
    bias = jax.random.uniform(kb, (OUT,), jnp.float32, -bound, bound)

    # Small case (single tile, grid=(1,)), shapes consistent with the module.
    B = 8
    x = jax.random.normal(kx, (B, IN), dtype=jnp.float32)
    out = jax.block_until_ready(simple_model_forward(x, weight, bias))
    ref = _reference(x, weight, bias)
    assert out.shape == (B, OUT)
    assert jnp.allclose(out, ref, atol=1e-5, rtol=1e-5), "mismatch vs reference (B=8)"

    # Larger case exercising the multi-tile grid + tail-padding path.
    B2 = 2500
    x2 = jax.random.normal(kx2, (B2, IN), dtype=jnp.float32)
    out2 = jax.block_until_ready(
        simple_model_forward(x2, weight, bias, block_rows=8))
    ref2 = _reference(x2, weight, bias)
    assert out2.shape == (B2, OUT)
    assert jnp.allclose(out2, ref2, atol=1e-5, rtol=1e-5), "mismatch vs reference (B=2500)"

    print("KERNEL_OK")
</pallas_src>

<mosaic_0001>
module attributes {stable_mosaic.version = 11 : i64} {
  func.func @_linear_sigmoid_kernel(%arg0: i32, %arg1: memref<3xf32, #tpu.memory_space<smem>>, %arg2: memref<1x256xf32, #tpu.memory_space<vmem>>, %arg3: memref<1x256xf32, #tpu.memory_space<vmem>>) attributes {dimension_semantics = [#tpu.dimension_semantics<parallel>], iteration_bounds = array<i64: 1>, scalar_prefetch = 0 : i64, scratch_operands = 0 : i64, tpu.core_type = #tpu.core_type<tc>, window_params = [{transform_indices = @transform_0, window_bounds = array<i64: 3>}, {transform_indices = @transform_1, window_bounds = array<i64: 1, 256>}, {transform_indices = @transform_2, window_bounds = array<i64: 1, 256>}]} {
    %c0 = arith.constant 0 : index
    %0 = memref.load %arg1[%c0] : memref<3xf32, #tpu.memory_space<smem>>
    %c1 = arith.constant 1 : index
    %1 = memref.load %arg1[%c1] : memref<3xf32, #tpu.memory_space<smem>>
    %c2 = arith.constant 2 : index
    %2 = memref.load %arg1[%c2] : memref<3xf32, #tpu.memory_space<smem>>
    %c0_0 = arith.constant 0 : index
    %c0_1 = arith.constant 0 : index
    %3 = vector.load %arg2[%c0_0, %c0_1] : memref<1x256xf32, #tpu.memory_space<vmem>>, vector<1x256xf32>
    %4 = vector.extract_strided_slice %3 {offsets = [0, 1], sizes = [1, 255], strides = [1, 1]} : vector<1x256xf32> to vector<1x255xf32>
    %5 = vector.extract_strided_slice %3 {offsets = [0, 0], sizes = [1, 1], strides = [1, 1]} : vector<1x256xf32> to vector<1x1xf32>
    %6 = tpu.concatenate %4, %5 in 1 : vector<1x255xf32>, vector<1x1xf32> -> vector<1x256xf32>
    %7 = vector.broadcast %0 : f32 to vector<1x256xf32>
    %8 = arith.mulf %3, %7 : vector<1x256xf32>
    %9 = vector.broadcast %1 : f32 to vector<1x256xf32>
    %10 = arith.mulf %6, %9 : vector<1x256xf32>
    %11 = arith.addf %8, %10 : vector<1x256xf32>
    %12 = vector.broadcast %2 : f32 to vector<1x256xf32>
    %13 = arith.addf %11, %12 : vector<1x256xf32>
    %cst = arith.constant 0.000000e+00 : f32
    %14 = vector.broadcast %cst : f32 to vector<1x256xf32>
    %15 = arith.subf %14, %13 : vector<1x256xf32>
    %16 = math.exp %15 : vector<1x256xf32>
    %cst_2 = arith.constant 1.000000e+00 : f32
    %17 = vector.broadcast %cst_2 : f32 to vector<1x256xf32>
    %18 = arith.addf %17, %16 : vector<1x256xf32>
    %cst_3 = arith.constant 1.000000e+00 : f32
    %19 = vector.broadcast %cst_3 : f32 to vector<1x256xf32>
    %20 = arith.divf %19, %18 : vector<1x256xf32>
    %c0_4 = arith.constant 0 : index
    %c0_5 = arith.constant 0 : index
    %21 = vector.load %arg3[%c0_4, %c0_5] : memref<1x256xf32, #tpu.memory_space<vmem>>, vector<1x256xf32>
    tpu.vector_store %arg3[%c0_4, %c0_5], %20 {strides = array<i32>} : memref<1x256xf32, #tpu.memory_space<vmem>>, vector<1x256xf32>,
    return
  }
  func.func @transform_0(%arg0: i32) -> i32 {
    %c0_i32 = arith.constant 0 : i32
    %c0_i32_0 = arith.constant 0 : i32
    return %c0_i32 : i32
  }
  func.func @transform_1(%arg0: i32) -> (i32, i32) {
    %c0_i32 = arith.constant 0 : i32
    %c0_i32_0 = arith.constant 0 : i32
    return %arg0, %c0_i32 : i32, i32
  }
  func.func @transform_2(%arg0: i32) -> (i32, i32) {
    %c0_i32 = arith.constant 0 : i32
    %c0_i32_0 = arith.constant 0 : i32
    return %arg0, %c0_i32 : i32, i32
  }
}

</mosaic_0001>

<llo_original>
// kernel: tpu_custom_call.1
$region0: #{tpu_custom_call.1}
  #allocation0 [shape = 'u32[]', space=smem, size = 0x4, offset = 0x4, fixed_abs, tag = 'smem constant byte address 0x4 - core index']
  #allocation1 [shape = 'u32[144,128]{1,0:T(1,128)}', space=vmem, size = 0x12000, scoped, tag = 'internal scratch']
  %s0 = inlined_call_operand.hbm [shape: f32[3], index: 0, kind: input, shape index: {}]
  %s1 = inlined_call_operand.hbm [shape: f32[1,256], index: 1, kind: input, shape index: {}]
  %s2 = inlined_call_operand.hbm [shape: f32[1,256], index: 2, kind: output, shape index: {}]
  %s3 = sld [smem:[#allocation0]]
  $region26: #{tpu_custom_call.1} parent=0
    _
  %s5 = ssub.s32 1, %s3
  %s6 = scalar_select 0, %s5, %s3
  $region1: #{tpu_custom_call.1} parent=0
    #allocation2 [shape = 'u8[512]{0}', space=smem, size = 0x200, scoped, tag = 'input window, operand 0, single buffered']
    #allocation3 [shape = 's32[1]{0}', space=sflag, size = 0x4, scoped, tag = 'scoped memory for tpu_custom_call.1']
    #allocation4 [shape = 's32[1]{0}', space=sflag, size = 0x4, scoped, tag = 'scoped memory for tpu_custom_call.1']
    #allocation5 [shape = 's32[1]{0}', space=sflag, size = 0x4, scoped, tag = 'scoped memory for tpu_custom_call.1']
    #allocation6 [shape = 'u8[1024]{0}', space=vmem, size = 0x400, scoped, tag = 'input window, operand 1, single buffered']
    #allocation7 [shape = 'u8[1024]{0}', space=vmem, size = 0x400, scoped, tag = 'output window, operand 0, single buffered']
    %7 = vsyncpa [#allocation5], 0
    %8 = vsyncpa [#allocation3], 0
    %9 = vsyncpa [#allocation4], 0
    // Predicated region
    $region2: #{tpu_custom_call.1} parent=1 // pred_check
      _
    $region3: #{tpu_custom_call.1} parent=1 // pred_check_branch
      %11 = sbr.rel (0) target = $region5
    $region4: #{tpu_custom_call.1} parent=1 // pred_region
      %s13 = ssub.s32 16, 16
      %14 = vsyncadd [#allocation5], %s13
      %17 = dma.hbm_to_smem %s0, 16, [#allocation2], [#allocation5]
    $region5: #{tpu_custom_call.1} parent=1 // pred_fallthru
      _
    // Predicated region
    $region6: #{tpu_custom_call.1} parent=1 // pred_check
      _
    $region7: #{tpu_custom_call.1} parent=1 // pred_check_branch
      %19 = sbr.rel (0) target = $region9
    $region8: #{tpu_custom_call.1} parent=1 // pred_region
      %s21 = ssub.s32 32, 32
      %22 = vsyncadd [#allocation3], %s21
      %s24 = sshll.u32 [#allocation6], 4
      %s25 = int_to_ptr.vmem [resolvable:$true] %s24
      %27 = dma.hbm_to_vmem [thread:$0]  %s1, 32, %s25, [#allocation3]
    $region9: #{tpu_custom_call.1} parent=1 // pred_fallthru
      _
    // Predicated region
    $region10: #{tpu_custom_call.1} parent=1 // pred_check
      _
    $region11: #{tpu_custom_call.1} parent=1 // pred_check_branch
      %29 = sbr.rel (0) target = $region13
    $region12: #{tpu_custom_call.1} parent=1 // pred_region
      %30 = dma.done [#allocation5], 16
    $region13: #{tpu_custom_call.1} parent=1 // pred_fallthru
      _
    // Predicated region
    $region14: #{tpu_custom_call.1} parent=1 // pred_check
      _
    $region15: #{tpu_custom_call.1} parent=1 // pred_check_branch
      %32 = sbr.rel (0) target = $region17
    $region16: #{tpu_custom_call.1} parent=1 // pred_region
      %33 = dma.done [#allocation3], 32
    $region17: #{tpu_custom_call.1} parent=1 // pred_fallthru
      _
    %34 = sfence
    %s35 = sld [smem:[#allocation2]]
    %s36 = sld [smem:[#allocation2 + $0x1]]
    %s37 = sld [smem:[#allocation2 + $0x2]]
    %v38 = vld [vmem:[#allocation6] sm:$0x3]
    %v40 = vlaneseq
    %v41 = vshrl.u32 %v40, 7
    %v42 = vsub.s32 0, %v41
    %v43 = vrot.slane %v38, %v42
    %v44 = vlaneseq
    %v45 = vshrl.u32 %v44, 7
    %v46 = vsub.s32 1, %v45
    %v47 = vrot.slane %v38, %v46
    %48 = vrot.lane.b32.xlu0 %v43, 127
    %v49 = vpop.permute.xlu0 %48
    %50 = vrot.lane.b32.xlu0 %v47, 127
    %v51 = vpop.permute.xlu0 %50
    %vm52 = vcmask 1039360
    %v53 = vsel %vm52, %v49, %v51
    %v57 = vsel %vm52, %v51, %v49
    %v58 = vstv %s35
    %v59 = vmul.f32 %v38, %v58
    %v60 = vstv %s36
    %v61 = vmul.f32 %v53, %v60
    %v62 = vmul.f32 %v57, %v60
    %v65 = vcombine.low %v61, %v62
    %v67 = vunpack.c.l.s4 1966171168
    %v68 = vunpack.c.0.s8 %v67
    %v69 = vlaneseq
    %v70 = vshrl.u32 %v69, 7
    %v71 = vsub.s32 %v68, %v70
    %v72 = vrot.slane %v65, %v71
    %v74 = vunpack.c.l.s4 1966171168
    %v75 = vunpack.c.0.s8 %v74
    %v76 = vlaneseq
    %v77 = vshrl.u32 %v76, 7
    %v78 = vsub.s32 %v75, %v77
    %v79 = vrot.slane %v72, %v78
    %v81 = vadd.f32 %v59, %v79
    %v82 = vstv %s37
    %v83 = vadd.f32 %v81, %v82
    %v84 = vsub.f32 0.0, %v83
    %v85 = vmul.f32 %v84, 1.442695
    %v86 = vpow.pop %v85
    %v87 = vadd.f32 %v86, 1.0
    %v88 = vrcp.pop %v87
    %v89 = vmul.f32 1.0, %v88
    %v90 = vlaneseq
    %vm91 = vcmp.ge.s32.totalorder %v90, 0
    %vm92 = vcmp.lt.s32.totalorder %v90, 256
    %vm93 = vmand %vm91, %vm92
    %94 = vst.msk [vmem:[#allocation7] sm:$0x3] %vm93, %v89
    // Predicated region
    $region18: #{tpu_custom_call.1} parent=1 // pred_check
      _
    $region19: #{tpu_custom_call.1} parent=1 // pred_check_branch
      %96 = sbr.rel (0) target = $region21
    $region20: #{tpu_custom_call.1} parent=1 // pred_region
      %s98 = ssub.s32 32, 32
      %99 = vsyncadd [#allocation4], %s98
      %s101 = sshll.u32 [#allocation7], 4
      %s102 = int_to_ptr.vmem [resolvable:$true] %s101
      %104 = dma.vmem_to_hbm [thread:$0]  %s102, 32, %s2, [#allocation4]
    $region21: #{tpu_custom_call.1} parent=1 // pred_fallthru
      _
    // Predicated region
    $region22: #{tpu_custom_call.1} parent=1 // pred_check
      _
    $region23: #{tpu_custom_call.1} parent=1 // pred_check_branch
      %106 = sbr.rel (0) target = $region25
    $region24: #{tpu_custom_call.1} parent=1 // pred_region
      %107 = dma.done [#allocation4], 32
    $region25: #{tpu_custom_call.1} parent=1 // pred_fallthru
      _
    %108 = vsyncpa [#allocation3], 1
    %109 = vsyncpa [#allocation4], 1
    %110 = vsyncpa [#allocation5], 1

</llo_original>
